<compile_context>
chip_gen: v7x
topology: tpu7x:2x2x1
jax: 0.10.0
libtpu: 0.0.40
codegen_flags: <defaults>
</compile_context>

<pallas_src>
import functools

import jax
import jax.numpy as jnp
from jax.experimental import pallas as pl
from jax.experimental.pallas import tpu as pltpu

BIG_NUMBER = 1e8   # stand-in for hs_config.PPOAgent.BIG_NUMBER
LANE = 128         # TPU lane width
SLAB_W = 128       # lane-dense packed-output width


def _round_up(x, m):
    return ((x + m - 1) // m) * m


# ----------------------------------------------------------------------------- kernel
def actor_critic_kernel(obs_ref, pa_ref,
                        w1_ref, b1_ref, w2_ref, b2_ref,
                        w3_ref, b3_ref, w4_ref, b4_ref,
                        out_ref, *, num_actions):
    x = obs_ref[...]                                        # (TB, D) f32

    def linear(h, w_ref, b_ref):
        w = w_ref[...]
        # weights may be bf16 (v6e/v7x MXU-native); accumulate in f32, bias in f32
        return jnp.dot(h.astype(w.dtype), w,
                       preferred_element_type=jnp.float32) + b_ref[...]

    # ---- fused actor||critic MLP: 3x (Linear+ReLU) + Linear ----
    h = jnp.maximum(linear(x, w1_ref, b1_ref), 0.0)         # (TB, Hf)
    h = jnp.maximum(linear(h, w2_ref, b2_ref), 0.0)
    h = jnp.maximum(linear(h, w3_ref, b3_ref), 0.0)
    out4 = linear(h, w4_ref, b4_ref)                        # (TB, OUTW) = [logits | value | 0...]

    value = out4[:, num_actions:num_actions + 1]            # (TB, 1)

    # ---- mask illegal actions (select, mask already padded to OUTW lanes) ----
    pa = pa_ref[...]                                        # (TB, OUTW), 0 beyond num_actions
    masked = jnp.where(pa > 0.0, out4, -BIG_NUMBER)

    # ---- Categorical: log-softmax + argmax + gather(log_prob) ----
    m = jnp.max(masked, axis=-1, keepdims=True)
    z = masked - m
    lse = jnp.log(jnp.sum(jnp.exp(z), axis=-1, keepdims=True))
    log_probs = z - lse                                     # (TB, OUTW)

    outw = masked.shape[-1]
    lanes = jax.lax.broadcasted_iota(jnp.int32, masked.shape, 1)
    # argmax(probs) == argmax(logits); first maximal index matches torch/jnp tie-break
    action = jnp.min(jnp.where(masked >= m, lanes, outw), axis=-1, keepdims=True)  # (TB,1) i32

    onehot = (lanes == action).astype(jnp.float32)
    logp = jnp.sum(log_probs * onehot, axis=-1, keepdims=True)                     # (TB,1)

    # ---- lane-dense packed output slab: [value, logp, action, 0, ...] ----
    # action is a small index (< 128): an exact f32 value-cast (no bitcast needed,
    # avoids denormal flush-to-zero hazards).
    slab_lanes = jax.lax.broadcasted_iota(jnp.int32, out_ref.shape, 1)
    slab = jnp.where(slab_lanes == 0, value,
           jnp.where(slab_lanes == 1, logp,
           jnp.where(slab_lanes == 2, action.astype(jnp.float32), 0.0)))
    out_ref[...] = slab


# ----------------------------------------------------------------------------- wrapper
def actor_critic_forward(observations, possible_actions, actor_params, critic_params,
                         *, matmul_dtype=jnp.float32, tile_b=512):
    """Returns (value (B,1) f32, action (B,1) i32, action_log_probs (B,1) f32).

    For production PPO rollouts, batch many envs/timesteps into one call rather
    than micro-calling at B~2 (per-call dispatch otherwise dominates).
    """
    obs = jnp.asarray(observations, jnp.float32)
    pa = jnp.asarray(possible_actions, jnp.float32)
    B, D = obs.shape
    A = pa.shape[1]
    H = int(actor_params[0][0].shape[0])       # hidden size

    Hf = max(LANE, _round_up(2 * H, LANE))     # fused (+padded) hidden width
    OUTW = max(LANE, _round_up(A + 1, LANE))   # fused (+padded) output width

    # ---- fuse actor + critic into one lane-padded MLP (trace-time, free) ----
    (aw1, ab1), (aw2, ab2), (aw3, ab3), (aw4, ab4) = [
        (jnp.asarray(w, jnp.float32), jnp.asarray(b, jnp.float32)) for (w, b) in actor_params]
    (cw1, cb1), (cw2, cb2), (cw3, cb3), (cw4, cb4) = [
        (jnp.asarray(w, jnp.float32), jnp.asarray(b, jnp.float32)) for (w, b) in critic_params]

    w1 = jnp.zeros((D, Hf), jnp.float32).at[:, :H].set(aw1.T).at[:, H:2 * H].set(cw1.T)
    b1 = jnp.zeros((1, Hf), jnp.float32).at[0, :H].set(ab1).at[0, H:2 * H].set(cb1)
    w2 = jnp.zeros((Hf, Hf), jnp.float32).at[:H, :H].set(aw2.T).at[H:2 * H, H:2 * H].set(cw2.T)
    b2 = jnp.zeros((1, Hf), jnp.float32).at[0, :H].set(ab2).at[0, H:2 * H].set(cb2)
    w3 = jnp.zeros((Hf, Hf), jnp.float32).at[:H, :H].set(aw3.T).at[H:2 * H, H:2 * H].set(cw3.T)
    b3 = jnp.zeros((1, Hf), jnp.float32).at[0, :H].set(ab3).at[0, H:2 * H].set(cb3)
    w4 = jnp.zeros((Hf, OUTW), jnp.float32).at[:H, :A].set(aw4.T).at[H:2 * H, A:A + 1].set(cw4.T)
    b4 = jnp.zeros((1, OUTW), jnp.float32).at[0, :A].set(ab4).at[0, A].set(cb4[0])

    # hidden-layer weights may be cast to bf16 (v6e/v7x); final fused layer (tiny
    # critic gain) and all biases stay f32 for accuracy.
    weights = [w1.astype(matmul_dtype), b1,
               w2.astype(matmul_dtype), b2,
               w3.astype(matmul_dtype), b3,
               w4, b4]

    # ---- batch padding & tiling ----
    B8 = _round_up(max(B, 1), 8)
    tb = _round_up(min(tile_b, B8), 8)
    Bp = _round_up(B8, tb)

    obs_p = jnp.pad(obs, ((0, Bp - B), (0, 0)))
    pa_p = jnp.pad(pa, ((0, Bp - B), (0, OUTW - A)))   # widen mask: padded lanes illegal

    grid = (Bp // tb,)
    data_specs = [
        pl.BlockSpec((tb, D), lambda i: (i, 0)),
        pl.BlockSpec((tb, OUTW), lambda i: (i, 0)),
    ]
    weight_specs = [pl.BlockSpec(w.shape, lambda i: (0, 0)) for w in weights]

    kernel = functools.partial(actor_critic_kernel, num_actions=A)

    slab = pl.pallas_call(
        kernel,
        out_shape=jax.ShapeDtypeStruct((Bp, SLAB_W), jnp.float32),
        grid=grid,
        in_specs=data_specs + weight_specs,
        out_specs=pl.BlockSpec((tb, SLAB_W), lambda i: (i, 0)),
        compiler_params=pltpu.CompilerParams(
            dimension_semantics=("parallel",)),
    )(obs_p, pa_p, *weights)

    value = slab[:B, 0:1]
    logp = slab[:B, 1:2]
    action = slab[:B, 2:3].astype(jnp.int32)
    return value, action, logp


# ----------------------------------------------------------------------------- param init
def orthogonal_init(key, out_dim, in_dim, gain):
    """Deterministic orthogonal init (same spirit as nn.init.orthogonal_)."""
    rows, cols = max(out_dim, in_dim), min(out_dim, in_dim)
    a = jax.random.normal(key, (rows, cols), dtype=jnp.float32)
    q, r = jnp.linalg.qr(a)
    q = q * jnp.sign(jnp.diagonal(r))
    if out_dim < in_dim:
        q = q.T
    return gain * q[:out_dim, :in_dim]


def make_mlp_params(key, dims, gains):
    """dims = [d0, d1, ..., dn]; returns list of (W (out,in), b (out,)) per layer."""
    params = []
    for i, gain in enumerate(gains):
        key, sub = jax.random.split(key)
        w = orthogonal_init(sub, dims[i + 1], dims[i], gain)
        b = jnp.zeros((dims[i + 1],), jnp.float32)
        params.append((w, b))
    return params


# ----------------------------------------------------------------------------- reference
def _ref_mlp(x, params):
    for i, (w, b) in enumerate(params):
        x = x @ w.T + b
        if i < len(params) - 1:
            x = jnp.maximum(x, 0.0)
    return x


def reference_distribution(obs, pa, actor_params):
    logits = _ref_mlp(obs, actor_params)
    logits = logits - (1.0 - pa) * BIG_NUMBER
    return logits, jax.nn.log_softmax(logits, axis=-1)


def reference_forward(obs, pa, actor_params, critic_params):
    value = _ref_mlp(obs, critic_params)
    logits, log_probs = reference_distribution(obs, pa, actor_params)
    action = jnp.argmax(logits, axis=-1, keepdims=True).astype(jnp.int32)
    logp = jnp.take_along_axis(log_probs, action, axis=-1)
    return value, action, logp


# ----------------------------------------------------------------------------- main
if __name__ == "__main__":
    # Small, module-consistent shapes.
    batch = 2
    num_inputs = 32        # self.num_inputs (encode_cards=False)
    hidden = 32            # hs_config.PPOAgent.hidden_size
    num_actions = 16       # self.num_possible_actions

    key = jax.random.PRNGKey(0)
    k_obs, k_pa, k_actor, k_critic = jax.random.split(key, 4)

    observations = jax.random.normal(k_obs, (batch, num_inputs), dtype=jnp.float32)
    possible_actions = (
        jax.random.uniform(k_pa, (batch, num_actions)) > 0.5
    ).astype(jnp.float32)
    possible_actions = possible_actions.at[:, 0].set(1.0)   # >=1 legal action per row

    hidden_gain = float(jnp.sqrt(2.0)) / 100.0
    actor_params = make_mlp_params(
        k_actor, [num_inputs, hidden, hidden, hidden, num_actions],
        gains=[hidden_gain, hidden_gain, hidden_gain, 0.1])      # reset_actor: gain 0.1
    critic_params = make_mlp_params(
        k_critic, [num_inputs, hidden, hidden, hidden, 1],
        gains=[hidden_gain, hidden_gain, hidden_gain, 0.001])    # reset_critic: gain 0.001

    # ---- f32 path, tiny batch (single grid step) ----
    value, action, logp = actor_critic_forward(
        observations, possible_actions, actor_params, critic_params)
    jax.block_until_ready((value, action, logp))

    v_ref, a_ref, lp_ref = reference_forward(
        observations, possible_actions, actor_params, critic_params)
    assert value.shape == (batch, 1) and action.shape == (batch, 1) and logp.shape == (batch, 1)
    assert jnp.allclose(value, v_ref, atol=1e-5), (value, v_ref)
    assert jnp.array_equal(action, a_ref), (action, a_ref)
    assert jnp.allclose(logp, lp_ref, atol=1e-5), (logp, lp_ref)

    # ---- f32 path, multi-tile grid (B not a multiple of the tile) ----
    batch2 = 40
    k_obs2, k_pa2 = jax.random.split(jax.random.PRNGKey(1))
    obs2 = jax.random.normal(k_obs2, (batch2, num_inputs), dtype=jnp.float32)
    pa2 = (jax.random.uniform(k_pa2, (batch2, num_actions)) > 0.5).astype(jnp.float32)
    pa2 = pa2.at[:, 0].set(1.0)
    v2, a2, lp2 = actor_critic_forward(obs2, pa2, actor_params, critic_params, tile_b=16)
    jax.block_until_ready((v2, a2, lp2))
    v2r, a2r, lp2r = reference_forward(obs2, pa2, actor_params, critic_params)
    assert jnp.allclose(v2, v2r, atol=1e-5)
    assert jnp.array_equal(a2, a2r)
    assert jnp.allclose(lp2, lp2r, atol=1e-5)

    # ---- bf16 matmul-operand path (v6e/v7x recommendation), relaxed checks ----
    v3, a3, lp3 = actor_critic_forward(
        observations, possible_actions, actor_params, critic_params,
        matmul_dtype=jnp.bfloat16)
    jax.block_until_ready((v3, a3, lp3))
    assert v3.shape == (batch, 1) and a3.shape == (batch, 1) and lp3.shape == (batch, 1)
    assert jnp.allclose(v3, v_ref, atol=1e-3)
    # chosen action must be legal, and its reported log-prob must match the
    # reference distribution's log-prob of that same action.
    assert bool(jnp.all(jnp.take_along_axis(possible_actions, a3, axis=1) > 0))
    _, lp_mat = reference_distribution(observations, possible_actions, actor_params)
    assert jnp.allclose(lp3, jnp.take_along_axis(lp_mat, a3, axis=1), atol=5e-3)

    print("KERNEL_OK")
</pallas_src>

<mosaic_0001>
module attributes {stable_mosaic.version = 11 : i64} {
  func.func @actor_critic_kernel(%arg0: i32, %arg1: memref<8x32xf32, #tpu.memory_space<vmem>>, %arg2: memref<8x128xf32, #tpu.memory_space<vmem>>, %arg3: memref<32x128xf32, #tpu.memory_space<vmem>>, %arg4: memref<1x128xf32, #tpu.memory_space<vmem>>, %arg5: memref<128x128xf32, #tpu.memory_space<vmem>>, %arg6: memref<1x128xf32, #tpu.memory_space<vmem>>, %arg7: memref<128x128xf32, #tpu.memory_space<vmem>>, %arg8: memref<1x128xf32, #tpu.memory_space<vmem>>, %arg9: memref<128x128xf32, #tpu.memory_space<vmem>>, %arg10: memref<1x128xf32, #tpu.memory_space<vmem>>, %arg11: memref<8x128xf32, #tpu.memory_space<vmem>>) attributes {dimension_semantics = [#tpu.dimension_semantics<parallel>], iteration_bounds = array<i64: 1>, scalar_prefetch = 0 : i64, scratch_operands = 0 : i64, tpu.core_type = #tpu.core_type<tc>, window_params = [{transform_indices = @transform_0, window_bounds = array<i64: 8, 32>}, {transform_indices = @transform_1, window_bounds = array<i64: 8, 128>}, {pipeline_mode = #tpu.pipeline_mode<synchronous>, transform_indices = @transform_2, window_bounds = array<i64: 32, 128>}, {pipeline_mode = #tpu.pipeline_mode<synchronous>, transform_indices = @transform_3, window_bounds = array<i64: 1, 128>}, {pipeline_mode = #tpu.pipeline_mode<synchronous>, transform_indices = @transform_4, window_bounds = array<i64: 128, 128>}, {pipeline_mode = #tpu.pipeline_mode<synchronous>, transform_indices = @transform_5, window_bounds = array<i64: 1, 128>}, {pipeline_mode = #tpu.pipeline_mode<synchronous>, transform_indices = @transform_6, window_bounds = array<i64: 128, 128>}, {pipeline_mode = #tpu.pipeline_mode<synchronous>, transform_indices = @transform_7, window_bounds = array<i64: 1, 128>}, {pipeline_mode = #tpu.pipeline_mode<synchronous>, transform_indices = @transform_8, window_bounds = array<i64: 128, 128>}, {pipeline_mode = #tpu.pipeline_mode<synchronous>, transform_indices = @transform_9, window_bounds = array<i64: 1, 128>}, {transform_indices = @transform_10, window_bounds = array<i64: 8, 128>}]} {
    %c0 = arith.constant 0 : index
    %c0_0 = arith.constant 0 : index
    %0 = vector.load %arg1[%c0, %c0_0] : memref<8x32xf32, #tpu.memory_space<vmem>>, vector<8x32xf32>
    %c0_1 = arith.constant 0 : index
    %c0_2 = arith.constant 0 : index
    %1 = vector.load %arg3[%c0_1, %c0_2] : memref<32x128xf32, #tpu.memory_space<vmem>>, vector<32x128xf32>
    %cst = arith.constant dense<0.000000e+00> : vector<8x128xf32>
    %2 = tpu.matmul %0, %1, %cst {dimension_numbers = #tpu.dot_dimension_numbers<[1], [0], [0], [1], [0, 0, 1, 1], [], []>} : vector<8x32xf32>, vector<32x128xf32>, vector<8x128xf32> -> vector<8x128xf32>
    %c0_3 = arith.constant 0 : index
    %c0_4 = arith.constant 0 : index
    %3 = vector.load %arg4[%c0_3, %c0_4] : memref<1x128xf32, #tpu.memory_space<vmem>>, vector<1x128xf32>
    %4 = vector.broadcast %3 : vector<1x128xf32> to vector<8x128xf32>
    %5 = arith.addf %2, %4 : vector<8x128xf32>
    %cst_5 = arith.constant 0.000000e+00 : f32
    %6 = vector.broadcast %cst_5 : f32 to vector<8x128xf32>
    %7 = arith.maximumf %5, %6 : vector<8x128xf32>
    %c0_6 = arith.constant 0 : index
    %c0_7 = arith.constant 0 : index
    %8 = vector.load %arg5[%c0_6, %c0_7] : memref<128x128xf32, #tpu.memory_space<vmem>>, vector<128x128xf32>
    %cst_8 = arith.constant dense<0.000000e+00> : vector<8x128xf32>
    %9 = tpu.matmul %7, %8, %cst_8 {dimension_numbers = #tpu.dot_dimension_numbers<[1], [0], [0], [1], [0, 0, 1, 1], [], []>} : vector<8x128xf32>, vector<128x128xf32>, vector<8x128xf32> -> vector<8x128xf32>
    %c0_9 = arith.constant 0 : index
    %c0_10 = arith.constant 0 : index
    %10 = vector.load %arg6[%c0_9, %c0_10] : memref<1x128xf32, #tpu.memory_space<vmem>>, vector<1x128xf32>
    %11 = vector.broadcast %10 : vector<1x128xf32> to vector<8x128xf32>
    %12 = arith.addf %9, %11 : vector<8x128xf32>
    %cst_11 = arith.constant 0.000000e+00 : f32
    %13 = vector.broadcast %cst_11 : f32 to vector<8x128xf32>
    %14 = arith.maximumf %12, %13 : vector<8x128xf32>
    %c0_12 = arith.constant 0 : index
    %c0_13 = arith.constant 0 : index
    %15 = vector.load %arg7[%c0_12, %c0_13] : memref<128x128xf32, #tpu.memory_space<vmem>>, vector<128x128xf32>
    %cst_14 = arith.constant dense<0.000000e+00> : vector<8x128xf32>
    %16 = tpu.matmul %14, %15, %cst_14 {dimension_numbers = #tpu.dot_dimension_numbers<[1], [0], [0], [1], [0, 0, 1, 1], [], []>} : vector<8x128xf32>, vector<128x128xf32>, vector<8x128xf32> -> vector<8x128xf32>
    %c0_15 = arith.constant 0 : index
    %c0_16 = arith.constant 0 : index
    %17 = vector.load %arg8[%c0_15, %c0_16] : memref<1x128xf32, #tpu.memory_space<vmem>>, vector<1x128xf32>
    %18 = vector.broadcast %17 : vector<1x128xf32> to vector<8x128xf32>
    %19 = arith.addf %16, %18 : vector<8x128xf32>
    %cst_17 = arith.constant 0.000000e+00 : f32
    %20 = vector.broadcast %cst_17 : f32 to vector<8x128xf32>
    %21 = arith.maximumf %19, %20 : vector<8x128xf32>
    %c0_18 = arith.constant 0 : index
    %c0_19 = arith.constant 0 : index
    %22 = vector.load %arg9[%c0_18, %c0_19] : memref<128x128xf32, #tpu.memory_space<vmem>>, vector<128x128xf32>
    %cst_20 = arith.constant dense<0.000000e+00> : vector<8x128xf32>
    %23 = tpu.matmul %21, %22, %cst_20 {dimension_numbers = #tpu.dot_dimension_numbers<[1], [0], [0], [1], [0, 0, 1, 1], [], []>} : vector<8x128xf32>, vector<128x128xf32>, vector<8x128xf32> -> vector<8x128xf32>
    %c0_21 = arith.constant 0 : index
    %c0_22 = arith.constant 0 : index
    %24 = vector.load %arg10[%c0_21, %c0_22] : memref<1x128xf32, #tpu.memory_space<vmem>>, vector<1x128xf32>
    %25 = vector.broadcast %24 : vector<1x128xf32> to vector<8x128xf32>
    %26 = arith.addf %23, %25 : vector<8x128xf32>
    %27 = vector.extract_strided_slice %26 {offsets = [0, 16], sizes = [8, 1], strides = [1, 1]} : vector<8x128xf32> to vector<8x1xf32>
    %c0_23 = arith.constant 0 : index
    %c0_24 = arith.constant 0 : index
    %28 = vector.load %arg2[%c0_23, %c0_24] : memref<8x128xf32, #tpu.memory_space<vmem>>, vector<8x128xf32>
    %cst_25 = arith.constant 0.000000e+00 : f32
    %29 = vector.broadcast %cst_25 : f32 to vector<8x128xf32>
    %30 = arith.cmpf ogt, %28, %29 : vector<8x128xf32>
    %cst_26 = arith.constant -1.000000e+08 : f32
    %31 = vector.broadcast %cst_26 : f32 to vector<8x128xf32>
    %32 = arith.select %30, %26, %31 : vector<8x128xi1>, vector<8x128xf32>
    %cst_27 = arith.constant dense<0xFF800000> : vector<8xf32>
    %33 = vector.multi_reduction <maximumf>, %32, %cst_27 [1] : vector<8x128xf32> to vector<8xf32>
    %34 = vector.shape_cast %33 : vector<8xf32> to vector<8x1xf32>
    %35 = vector.broadcast %34 : vector<8x1xf32> to vector<8x128xf32>
    %36 = arith.subf %32, %35 : vector<8x128xf32>
    %37 = math.exp %36 : vector<8x128xf32>
    %cst_28 = arith.constant dense<0.000000e+00> : vector<8xf32>
    %38 = vector.multi_reduction <add>, %37, %cst_28 [1] : vector<8x128xf32> to vector<8xf32>
    %39 = vector.shape_cast %38 : vector<8xf32> to vector<8x1xf32>
    %40 = math.log %39 : vector<8x1xf32>
    %41 = vector.broadcast %40 : vector<8x1xf32> to vector<8x128xf32>
    %42 = arith.subf %36, %41 : vector<8x128xf32>
    %43 = tpu.iota {dimensions = array<i32: 1>} : vector<8x128xi32>
    %44 = vector.broadcast %34 : vector<8x1xf32> to vector<8x128xf32>
    %45 = arith.cmpf oge, %32, %44 : vector<8x128xf32>
    %c128_i32 = arith.constant 128 : i32
    %46 = vector.broadcast %c128_i32 : i32 to vector<8x128xi32>
    %47 = arith.select %45, %43, %46 : vector<8x128xi1>, vector<8x128xi32>
    %cst_29 = arith.constant dense<2147483647> : vector<8xi32>
    %48 = vector.multi_reduction <minsi>, %47, %cst_29 [1] : vector<8x128xi32> to vector<8xi32>
    %49 = vector.shape_cast %48 : vector<8xi32> to vector<8x1xi32>
    %50 = vector.broadcast %49 : vector<8x1xi32> to vector<8x128xi32>
    %51 = arith.cmpi eq, %43, %50 : vector<8x128xi32>
    %52 = arith.extui %51 : vector<8x128xi1> to vector<8x128xi32>
    %53 = arith.sitofp %52 : vector<8x128xi32> to vector<8x128xf32>
    %54 = arith.mulf %42, %53 : vector<8x128xf32>
    %cst_30 = arith.constant dense<0.000000e+00> : vector<8xf32>
    %55 = vector.multi_reduction <add>, %54, %cst_30 [1] : vector<8x128xf32> to vector<8xf32>
    %56 = vector.shape_cast %55 : vector<8xf32> to vector<8x1xf32>
    %57 = tpu.iota {dimensions = array<i32: 1>} : vector<8x128xi32>
    %c0_i32 = arith.constant 0 : i32
    %58 = vector.broadcast %c0_i32 : i32 to vector<8x128xi32>
    %59 = arith.cmpi eq, %57, %58 : vector<8x128xi32>
    %c1_i32 = arith.constant 1 : i32
    %60 = vector.broadcast %c1_i32 : i32 to vector<8x128xi32>
    %61 = arith.cmpi eq, %57, %60 : vector<8x128xi32>
    %c2_i32 = arith.constant 2 : i32
    %62 = vector.broadcast %c2_i32 : i32 to vector<8x128xi32>
    %63 = arith.cmpi eq, %57, %62 : vector<8x128xi32>
    %64 = arith.sitofp %49 : vector<8x1xi32> to vector<8x1xf32>
    %cst_31 = arith.constant 0.000000e+00 : f32
    %65 = vector.shape_cast %64 : vector<8x1xf32> to vector<8x1xf32>
    %66 = vector.broadcast %65 : vector<8x1xf32> to vector<8x128xf32>
    %67 = vector.broadcast %cst_31 : f32 to vector<8x128xf32>
    %68 = arith.select %63, %66, %67 : vector<8x128xi1>, vector<8x128xf32>
    %69 = vector.shape_cast %56 : vector<8x1xf32> to vector<8x1xf32>
    %70 = vector.broadcast %69 : vector<8x1xf32> to vector<8x128xf32>
    %71 = arith.select %61, %70, %68 : vector<8x128xi1>, vector<8x128xf32>
    %72 = vector.shape_cast %27 : vector<8x1xf32> to vector<8x1xf32>
    %73 = vector.broadcast %72 : vector<8x1xf32> to vector<8x128xf32>
    %74 = arith.select %59, %73, %71 : vector<8x128xi1>, vector<8x128xf32>
    %c0_32 = arith.constant 0 : index
    %c0_33 = arith.constant 0 : index
    %75 = vector.load %arg11[%c0_32, %c0_33] : memref<8x128xf32, #tpu.memory_space<vmem>>, vector<8x128xf32>
    tpu.vector_store %arg11[%c0_32, %c0_33], %74 {strides = array<i32>} : memref<8x128xf32, #tpu.memory_space<vmem>>, vector<8x128xf32>,
    return
  }
  func.func @transform_0(%arg0: i32) -> (i32, i32) {
    %c0_i32 = arith.constant 0 : i32
    %c0_i32_0 = arith.constant 0 : i32
    return %arg0, %c0_i32 : i32, i32
  }
  func.func @transform_1(%arg0: i32) -> (i32, i32) {
    %c0_i32 = arith.constant 0 : i32
    %c0_i32_0 = arith.constant 0 : i32
    return %arg0, %c0_i32 : i32, i32
  }
  func.func @transform_2(%arg0: i32) -> (i32, i32) {
    %c0_i32 = arith.constant 0 : i32
    %c0_i32_0 = arith.constant 0 : i32
    %c0_i32_1 = arith.constant 0 : i32
    return %c0_i32, %c0_i32_0 : i32, i32
  }
  func.func @transform_3(%arg0: i32) -> (i32, i32) {
    %c0_i32 = arith.constant 0 : i32
    %c0_i32_0 = arith.constant 0 : i32
    %c0_i32_1 = arith.constant 0 : i32
    return %c0_i32, %c0_i32_0 : i32, i32
  }
  func.func @transform_4(%arg0: i32) -> (i32, i32) {
    %c0_i32 = arith.constant 0 : i32
    %c0_i32_0 = arith.constant 0 : i32
    %c0_i32_1 = arith.constant 0 : i32
    return %c0_i32, %c0_i32_0 : i32, i32
  }
  func.func @transform_5(%arg0: i32) -> (i32, i32) {
    %c0_i32 = arith.constant 0 : i32
    %c0_i32_0 = arith.constant 0 : i32
    %c0_i32_1 = arith.constant 0 : i32
    return %c0_i32, %c0_i32_0 : i32, i32
  }
  func.func @transform_6(%arg0: i32) -> (i32, i32) {
    %c0_i32 = arith.constant 0 : i32
    %c0_i32_0 = arith.constant 0 : i32
    %c0_i32_1 = arith.constant 0 : i32
    return %c0_i32, %c0_i32_0 : i32, i32
  }
  func.func @transform_7(%arg0: i32) -> (i32, i32) {
    %c0_i32 = arith.constant 0 : i32
    %c0_i32_0 = arith.constant 0 : i32
    %c0_i32_1 = arith.constant 0 : i32
    return %c0_i32, %c0_i32_0 : i32, i32
  }
  func.func @transform_8(%arg0: i32) -> (i32, i32) {
    %c0_i32 = arith.constant 0 : i32
    %c0_i32_0 = arith.constant 0 : i32
    %c0_i32_1 = arith.constant 0 : i32
    return %c0_i32, %c0_i32_0 : i32, i32
  }
  func.func @transform_9(%arg0: i32) -> (i32, i32) {
    %c0_i32 = arith.constant 0 : i32
    %c0_i32_0 = arith.constant 0 : i32
    %c0_i32_1 = arith.constant 0 : i32
    return %c0_i32, %c0_i32_0 : i32, i32
  }
  func.func @transform_10(%arg0: i32) -> (i32, i32) {
    %c0_i32 = arith.constant 0 : i32
    %c0_i32_0 = arith.constant 0 : i32
    return %arg0, %c0_i32 : i32, i32
  }
}

</mosaic_0001>

<llo_original>
// kernel: tpu_custom_call.1
$region0: #{tpu_custom_call.1}
  #allocation0 [shape = 'u32[]', space=smem, size = 0x4, offset = 0x4, fixed_abs, tag = 'smem constant byte address 0x4 - core index']
  #allocation1 [shape = 'u32[144,128]{1,0:T(1,128)}', space=vmem, size = 0x12000, scoped, tag = 'internal scratch']
  %s0 = inlined_call_operand.hbm [shape: f32[8,32], index: 0, kind: input, shape index: {}]
  %s1 = inlined_call_operand.hbm [shape: f32[8,128], index: 1, kind: input, shape index: {}]
  %s2 = inlined_call_operand.hbm [shape: f32[32,128], index: 2, kind: input, shape index: {}]
  %s3 = inlined_call_operand.vmem [shape: f32[1,128], index: 3, kind: input, shape index: {}]
  %s4 = inlined_call_operand.hbm [shape: f32[128,128], index: 4, kind: input, shape index: {}]
  %s5 = inlined_call_operand.vmem [shape: f32[1,128], index: 5, kind: input, shape index: {}]
  %s6 = inlined_call_operand.hbm [shape: f32[128,128], index: 6, kind: input, shape index: {}]
  %s7 = inlined_call_operand.vmem [shape: f32[1,128], index: 7, kind: input, shape index: {}]
  %s8 = inlined_call_operand.hbm [shape: f32[128,128], index: 8, kind: input, shape index: {}]
  %s9 = inlined_call_operand.vmem [shape: f32[1,128], index: 9, kind: input, shape index: {}]
  %s10 = inlined_call_operand.hbm [shape: f32[8,128], index: 10, kind: output, shape index: {}]
  %s11 = sld [smem:[#allocation0]]
  $region74: #{tpu_custom_call.1} parent=0
    _
  %s13 = ssub.s32 1, %s11
  %s14 = scalar_select 0, %s13, %s11
  $region1: #{tpu_custom_call.1} parent=0
    #allocation2 [shape = 'u8[4096]{0}', space=vmem, size = 0x1000, scoped, tag = 'input window, operand 0, single buffered']
    #allocation3 [shape = 's32[1]{0}', space=sflag, size = 0x4, scoped, tag = 'scoped memory for tpu_custom_call.1']
    #allocation4 [shape = 's32[1]{0}', space=sflag, size = 0x4, scoped, tag = 'scoped memory for tpu_custom_call.1']
    #allocation5 [shape = 'u8[4096]{0}', space=vmem, size = 0x1000, scoped, tag = 'input window, operand 1, single buffered']
    #allocation6 [shape = 's32[1]{0}', space=sflag, size = 0x4, scoped, tag = 'scoped memory for tpu_custom_call.1']
    #allocation7 [shape = 'u8[16384]{0}', space=vmem, size = 0x4000, scoped, tag = 'input window, operand 2, single buffered']
    #allocation8 [shape = 'u8[65536]{0}', space=vmem, size = 0x10000, scoped, tag = 'input window, operand 4, single buffered']
    #allocation9 [shape = 's32[1]{0}', space=sflag, size = 0x4, scoped, tag = 'scoped memory for tpu_custom_call.1']
    #allocation10 [shape = 'u8[65536]{0}', space=vmem, size = 0x10000, scoped, tag = 'input window, operand 6, single buffered']
    #allocation11 [shape = 'u8[65536]{0}', space=vmem, size = 0x10000, scoped, tag = 'input window, operand 8, single buffered']
    #allocation12 [shape = 's32[1]{0}', space=sflag, size = 0x4, scoped, tag = 'scoped memory for tpu_custom_call.1']
    #allocation13 [shape = 'u8[4096]{0}', space=vmem, size = 0x1000, scoped, tag = 'output window, operand 0, single buffered']
    %15 = vsyncpa [#allocation3], 0
    %16 = vsyncpa [#allocation6], 0
    %17 = vsyncpa [#allocation9], 0
    %18 = vsyncpa [#allocation12], 0
    %19 = vsyncpa [#allocation4], 0
    // Predicated region
    $region2: #{tpu_custom_call.1} parent=1 // pred_check
      _
    $region3: #{tpu_custom_call.1} parent=1 // pred_check_branch
      %21 = sbr.rel (0) target = $region5
    $region4: #{tpu_custom_call.1} parent=1 // pred_region
      %s23 = ssub.s32 128, 128
      %24 = vsyncadd [#allocation3], %s23
      %s26 = sshll.u32 [#allocation2], 4
      %s27 = int_to_ptr.vmem [resolvable:$true] %s26
      %29 = dma.hbm_to_vmem [thread:$0]  %s0, 128, %s27, [#allocation3]
    $region5: #{tpu_custom_call.1} parent=1 // pred_fallthru
      _
    // Predicated region
    $region6: #{tpu_custom_call.1} parent=1 // pred_check
      _
    $region7: #{tpu_custom_call.1} parent=1 // pred_check_branch
      %31 = sbr.rel (0) target = $region9
    $region8: #{tpu_custom_call.1} parent=1 // pred_region
      %s33 = ssub.s32 128, 128
      %34 = vsyncadd [#allocation6], %s33
      %s36 = sshll.u32 [#allocation5], 4
      %s37 = int_to_ptr.vmem [resolvable:$true] %s36
      %39 = dma.hbm_to_vmem [thread:$0]  %s1, 128, %s37, [#allocation6]
    $region9: #{tpu_custom_call.1} parent=1 // pred_fallthru
      _
    // Predicated region
    $region10: #{tpu_custom_call.1} parent=1 // pred_check
      _
    $region11: #{tpu_custom_call.1} parent=1 // pred_check_branch
      %41 = sbr.rel (0) target = $region13
    $region12: #{tpu_custom_call.1} parent=1 // pred_region
      %s43 = ssub.s32 512, 512
      %44 = vsyncadd [#allocation6], %s43
      %s45 = sshll.u32 [#allocation7], 4
      %s46 = int_to_ptr.vmem [resolvable:$true] %s45
      %51 = dma.hbm_to_vmem [thread:$0]  %s2, 512, %s46, [#allocation6], 128, 128, 8
    $region13: #{tpu_custom_call.1} parent=1 // pred_fallthru
      _
    // Predicated region
    $region14: #{tpu_custom_call.1} parent=1 // pred_check
      _
    $region15: #{tpu_custom_call.1} parent=1 // pred_check_branch
      %53 = sbr.rel (0) target = $region17
    $region16: #{tpu_custom_call.1} parent=1 // pred_region
      _
    $region17: #{tpu_custom_call.1} parent=1 // pred_fallthru
      _
    // Predicated region
    $region18: #{tpu_custom_call.1} parent=1 // pred_check
      _
    $region19: #{tpu_custom_call.1} parent=1 // pred_check_branch
      %55 = sbr.rel (0) target = $region21
    $region20: #{tpu_custom_call.1} parent=1 // pred_region
      %s57 = ssub.s32 2048, 2048
      %58 = vsyncadd [#allocation9], %s57
      %s59 = sshll.u32 [#allocation8], 4
      %s60 = int_to_ptr.vmem [resolvable:$true] %s59
      %65 = dma.hbm_to_vmem [thread:$0]  %s4, 2048, %s60, [#allocation9], 128, 128, 8
    $region21: #{tpu_custom_call.1} parent=1 // pred_fallthru
      _
    // Predicated region
    $region22: #{tpu_custom_call.1} parent=1 // pred_check
      _
    $region23: #{tpu_custom_call.1} parent=1 // pred_check_branch
      %67 = sbr.rel (0) target = $region25
    $region24: #{tpu_custom_call.1} parent=1 // pred_region
      _
    $region25: #{tpu_custom_call.1} parent=1 // pred_fallthru
      _
    // Predicated region
    $region26: #{tpu_custom_call.1} parent=1 // pred_check
      _
    $region27: #{tpu_custom_call.1} parent=1 // pred_check_branch
      %69 = sbr.rel (0) target = $region29
    $region28: #{tpu_custom_call.1} parent=1 // pred_region
      %s71 = ssub.s32 2048, 2048
      %72 = vsyncadd [#allocation9], %s71
      %s73 = sshll.u32 [#allocation10], 4
      %s74 = int_to_ptr.vmem [resolvable:$true] %s73
      %79 = dma.hbm_to_vmem [thread:$0]  %s6, 2048, %s74, [#allocation9], 128, 128, 8
    $region29: #{tpu_custom_call.1} parent=1 // pred_fallthru
      _
    // Predicated region
    $region30: #{tpu_custom_call.1} parent=1 // pred_check
      _
    $region31: #{tpu_custom_call.1} parent=1 // pred_check_branch
      %81 = sbr.rel (0) target = $region33
    $region32: #{tpu_custom_call.1} parent=1 // pred_region
      _
    $region33: #{tpu_custom_call.1} parent=1 // pred_fallthru
      _
    // Predicated region
    $region34: #{tpu_custom_call.1} parent=1 // pred_check
      _
    $region35: #{tpu_custom_call.1} parent=1 // pred_check_branch
      %83 = sbr.rel (0) target = $region37
    $region36: #{tpu_custom_call.1} parent=1 // pred_region
      %s85 = ssub.s32 2048, 2048
      %86 = vsyncadd [#allocation12], %s85
      %s87 = sshll.u32 [#allocation11], 4
      %s88 = int_to_ptr.vmem [resolvable:$true] %s87
      %93 = dma.hbm_to_vmem [thread:$0]  %s8, 2048, %s88, [#allocation12], 128, 128, 8
    $region37: #{tpu_custom_call.1} parent=1 // pred_fallthru
      _
    // Predicated region
    $region38: #{tpu_custom_call.1} parent=1 // pred_check
      _
    $region39: #{tpu_custom_call.1} parent=1 // pred_check_branch
      %95 = sbr.rel (0) target = $region41
    $region40: #{tpu_custom_call.1} parent=1 // pred_region
      _
    $region41: #{tpu_custom_call.1} parent=1 // pred_fallthru
      _
    // Predicated region
    $region42: #{tpu_custom_call.1} parent=1 // pred_check
      _
    $region43: #{tpu_custom_call.1} parent=1 // pred_check_branch
      %97 = sbr.rel (0) target = $region45
    $region44: #{tpu_custom_call.1} parent=1 // pred_region
      %98 = dma.done [#allocation3], 128
    $region45: #{tpu_custom_call.1} parent=1 // pred_fallthru
      _
    // Predicated region
    $region46: #{tpu_custom_call.1} parent=1 // pred_check
      _
    $region47: #{tpu_custom_call.1} parent=1 // pred_check_branch
      %100 = sbr.rel (0) target = $region49
    $region48: #{tpu_custom_call.1} parent=1 // pred_region
      %101 = dma.done [#allocation6], 128
    $region49: #{tpu_custom_call.1} parent=1 // pred_fallthru
      _
    // Predicated region
    $region50: #{tpu_custom_call.1} parent=1 // pred_check
      _
    $region51: #{tpu_custom_call.1} parent=1 // pred_check_branch
      %103 = sbr.rel (0) target = $region53
    $region52: #{tpu_custom_call.1} parent=1 // pred_region
      %104 = dma.done [#allocation6], 512
    $region53: #{tpu_custom_call.1} parent=1 // pred_fallthru
      _
    // Predicated region
    $region54: #{tpu_custom_call.1} parent=1 // pred_check
      _
    $region55: #{tpu_custom_call.1} parent=1 // pred_check_branch
      %106 = sbr.rel (0) target = $region57
    $region56: #{tpu_custom_call.1} parent=1 // pred_region
      %107 = dma.done [#allocation9], 2048
    $region57: #{tpu_custom_call.1} parent=1 // pred_fallthru
      _
    // Predicated region
    $region58: #{tpu_custom_call.1} parent=1 // pred_check
      _
    $region59: #{tpu_custom_call.1} parent=1 // pred_check_branch
      %109 = sbr.rel (0) target = $region61
    $region60: #{tpu_custom_call.1} parent=1 // pred_region
      %110 = dma.done [#allocation9], 2048
    $region61: #{tpu_custom_call.1} parent=1 // pred_fallthru
      _
    // Predicated region
    $region62: #{tpu_custom_call.1} parent=1 // pred_check
      _
    $region63: #{tpu_custom_call.1} parent=1 // pred_check_branch
      %112 = sbr.rel (0) target = $region65
    $region64: #{tpu_custom_call.1} parent=1 // pred_region
      %113 = dma.done [#allocation12], 2048
    $region65: #{tpu_custom_call.1} parent=1 // pred_fallthru
      _
    %v114 = vld [vmem:[#allocation2] sm:$0xff]
    %v115 = vld [vmem:[#allocation7] sm:$0xff]
    %v116 = vld [vmem:[#allocation7 + $0x8] sm:$0xff]
    %v117 = vld [vmem:[#allocation7 + $0x10] sm:$0xff]
    %v118 = vld [vmem:[#allocation7 + $0x18] sm:$0xff]
    %v119 = vld [vmem:[%s3] sm:$0x1]
    %v121 = vlaneseq
    %v122 = vshrl.u32 %v121, 7
    %v123 = vsub.s32 0, %v122
    %v124 = vrot.slane %v119, %v123
    %vm126 = vcmask 261120
    %v128 = vsel %vm126, %v114, 0
    %130 = vmatprep.subr.mxu0 0.0
    %131 = vmatpush1.msra.mxu0 %v115
    %132 = vmatprep.subr.mxu0 0.0
    %133 = vmatpush1.msra.mxu0 %v116
    %134 = vmatprep.subr.mxu0 0.0
    %135 = vmatpush1.msra.mxu0 %v117
    %136 = vmatprep.subr.mxu0 0.0
    %137 = vmatpush1.msra.mxu0 %v118
    %138 = vmatprep.subr.mxu0 0.0
    %139 = vmatpush1.msra.mxu0 0.0
    %140 = vmatprep.subr.mxu0 0.0
    %141 = vmatpush1.msra.mxu0 0.0
    %142 = vmatprep.subr.mxu0 0.0
    %143 = vmatpush1.msra.mxu0 0.0
    %144 = vmatprep.subr.mxu0 0.0
    %145 = vmatpush1.msra.mxu0 0.0
    %146 = vmatprep.subr.mxu0 0.0
    %147 = vmatpush1.msra.mxu0 0.0
    %148 = vmatprep.subr.mxu0 0.0
    %149 = vmatpush1.msra.mxu0 0.0
    %150 = vmatprep.subr.mxu0 0.0
    %151 = vmatpush1.msra.mxu0 0.0
    %152 = vmatprep.subr.mxu0 0.0
    %153 = vmatpush1.msra.mxu0 0.0
    %154 = vmatprep.subr.mxu0 0.0
    %155 = vmatpush1.msra.mxu0 0.0
    %156 = vmatprep.subr.mxu0 0.0
    %157 = vmatpush1.msra.mxu0 0.0
    %158 = vmatprep.subr.mxu0 0.0
    %159 = vmatpush1.msra.mxu0 0.0
    %160 = vmatprep.subr.mxu0 0.0
    %161 = vmatpush1.msra.mxu0 0.0
    %162 = vmatprep.subr.mxu0 0.0
    %163 = vmatpush1.msra.mxu0 0.0
    %164 = vmatprep.subr.mxu0 0.0
    %165 = vmatpush1.msra.mxu0 0.0
    %166 = vmatprep.subr.mxu0 0.0
    %167 = vmatpush1.msra.mxu0 0.0
    %168 = vmatprep.subr.mxu0 0.0
    %169 = vmatpush1.msra.mxu0 0.0
    %170 = vmatprep.subr.mxu0 0.0
    %171 = vmatpush1.msra.mxu0 0.0
    %172 = vmatprep.subr.mxu0 0.0
    %173 = vmatpush1.msra.mxu0 0.0
    %174 = vmatprep.subr.mxu0 0.0
    %175 = vmatpush1.msra.mxu0 0.0
    %176 = vmatprep.subr.mxu0 0.0
    %177 = vmatpush1.msra.mxu0 0.0
    %178 = vmatprep.subr.mxu0 0.0
    %179 = vmatpush1.msra.mxu0 0.0
    %180 = vmatprep.subr.mxu0 0.0
    %181 = vmatpush1.msra.mxu0 0.0
    %182 = vmatprep.subr.mxu0 0.0
    %183 = vmatpush1.msra.mxu0 0.0
    %184 = vmatprep.subr.mxu0 0.0
    %185 = vmatpush1.msra.mxu0 0.0
    %186 = vmatprep.subr.mxu0 0.0
    %187 = vmatpush1.msra.mxu0 0.0
    %188 = vmatprep.subr.mxu0 0.0
    %189 = vmatpush1.msra.mxu0 0.0
    %190 = vmatprep.subr.mxu0 0.0
    %191 = vmatpush1.msra.mxu0 0.0
    %192 = vmatprep.subr.mxu0 0.0
    %193 = vmatpush1.msra.mxu0 0.0
    %194 = vmatprep.mubr.f32.mxu0 0.0
    %195 = vmatmul.mubr.f32.gmra.mrb[0].mxu0 %v128
    %v196 = vpop.f32.mrb[0].mxu0
    %v197 = vadd.f32 %v124, %v196
    %v198 = vpop.f32.mrb[0].mxu0
    %199 = vdwg.mxu0
    %v200 = vmax.f32 %v197, 0.0
    %v201 = vld [vmem:[#allocation8] sm:$0xff]
    %v202 = vld [vmem:[#allocation8 + $0x8] sm:$0xff]
    %v203 = vld [vmem:[#allocation8 + $0x10] sm:$0xff]
    %v204 = vld [vmem:[#allocation8 + $0x18] sm:$0xff]
    %v205 = vld [vmem:[#allocation8 + $0x20] sm:$0xff]
    %v206 = vld [vmem:[#allocation8 + $0x28] sm:$0xff]
    %v207 = vld [vmem:[#allocation8 + $0x30] sm:$0xff]
    %v208 = vld [vmem:[#allocation8 + $0x38] sm:$0xff]
    %v209 = vld [vmem:[#allocation8 + $0x40] sm:$0xff]
    %v210 = vld [vmem:[#allocation8 + $0x48] sm:$0xff]
    %v211 = vld [vmem:[#allocation8 + $0x50] sm:$0xff]
    %v212 = vld [vmem:[#allocation8 + $0x58] sm:$0xff]
    %v213 = vld [vmem:[#allocation8 + $0x60] sm:$0xff]
    %v214 = vld [vmem:[#allocation8 + $0x68] sm:$0xff]
    %v215 = vld [vmem:[#allocation8 + $0x70] sm:$0xff]
    %v216 = vld [vmem:[#allocation8 + $0x78] sm:$0xff]
    %v217 = vld [vmem:[%s5] sm:$0x1]
    %v219 = vlaneseq
    %v220 = vshrl.u32 %v219, 7
    %v221 = vsub.s32 0, %v220
    %v222 = vrot.slane %v217, %v221
    %224 = vmatprep.subr.mxu0 0.0
    %225 = vmatpush1.msra.mxu0 %v201
    %226 = vmatprep.subr.mxu0 0.0
    %227 = vmatpush1.msra.mxu0 %v202
    %228 = vmatprep.subr.mxu0 0.0
    %229 = vmatpush1.msra.mxu0 %v203
    %230 = vmatprep.subr.mxu0 0.0
    %231 = vmatpush1.msra.mxu0 %v204
    %232 = vmatprep.subr.mxu0 0.0
    %233 = vmatpush1.msra.mxu0 %v205
    %234 = vmatprep.subr.mxu0 0.0
    %235 = vmatpush1.msra.mxu0 %v206
    %236 = vmatprep.subr.mxu0 0.0
    %237 = vmatpush1.msra.mxu0 %v207
    %238 = vmatprep.subr.mxu0 0.0
    %239 = vmatpush1.msra.mxu0 %v208
    %240 = vmatprep.subr.mxu0 0.0
    %241 = vmatpush1.msra.mxu0 %v209
    %242 = vmatprep.subr.mxu0 0.0
    %243 = vmatpush1.msra.mxu0 %v210
    %244 = vmatprep.subr.mxu0 0.0
    %245 = vmatpush1.msra.mxu0 %v211
    %246 = vmatprep.subr.mxu0 0.0
    %247 = vmatpush1.msra.mxu0 %v212
    %248 = vmatprep.subr.mxu0 0.0
    %249 = vmatpush1.msra.mxu0 %v213
    %250 = vmatprep.subr.mxu0 0.0
    %251 = vmatpush1.msra.mxu0 %v214
    %252 = vmatprep.subr.mxu0 0.0
    %253 = vmatpush1.msra.mxu0 %v215
    %254 = vmatprep.subr.mxu0 0.0
    %255 = vmatpush1.msra.mxu0 %v216
    %256 = vmatprep.subr.mxu0 0.0
    %257 = vmatpush1.msra.mxu0 0.0
    %258 = vmatprep.subr.mxu0 0.0
    %259 = vmatpush1.msra.mxu0 0.0
    %260 = vmatprep.subr.mxu0 0.0
    %261 = vmatpush1.msra.mxu0 0.0
    %262 = vmatprep.subr.mxu0 0.0
    %263 = vmatpush1.msra.mxu0 0.0
    %264 = vmatprep.subr.mxu0 0.0
    %265 = vmatpush1.msra.mxu0 0.0
    %266 = vmatprep.subr.mxu0 0.0
    %267 = vmatpush1.msra.mxu0 0.0
    %268 = vmatprep.subr.mxu0 0.0
    %269 = vmatpush1.msra.mxu0 0.0
    %270 = vmatprep.subr.mxu0 0.0
    %271 = vmatpush1.msra.mxu0 0.0
    %272 = vmatprep.subr.mxu0 0.0
    %273 = vmatpush1.msra.mxu0 0.0
    %274 = vmatprep.subr.mxu0 0.0
    %275 = vmatpush1.msra.mxu0 0.0
    %276 = vmatprep.subr.mxu0 0.0
    %277 = vmatpush1.msra.mxu0 0.0
    %278 = vmatprep.subr.mxu0 0.0
    %279 = vmatpush1.msra.mxu0 0.0
    %280 = vmatprep.subr.mxu0 0.0
    %281 = vmatpush1.msra.mxu0 0.0
    %282 = vmatprep.subr.mxu0 0.0
    %283 = vmatpush1.msra.mxu0 0.0
    %284 = vmatprep.subr.mxu0 0.0
    %285 = vmatpush1.msra.mxu0 0.0
    %286 = vmatprep.subr.mxu0 0.0
    %287 = vmatpush1.msra.mxu0 0.0
    %288 = vmatprep.mubr.f32.mxu0 0.0
    %289 = vmatmul.mubr.f32.gmra.mrb[0].mxu0 %v200
    %v290 = vpop.f32.mrb[0].mxu0
    %v291 = vadd.f32 %v222, %v290
    %v292 = vpop.f32.mrb[0].mxu0
    %293 = vdwg.mxu0
    %v294 = vmax.f32 %v291, 0.0
    %v295 = vld [vmem:[#allocation10] sm:$0xff]
    %v296 = vld [vmem:[#allocation10 + $0x8] sm:$0xff]
    %v297 = vld [vmem:[#allocation10 + $0x10] sm:$0xff]
    %v298 = vld [vmem:[#allocation10 + $0x18] sm:$0xff]
    %v299 = vld [vmem:[#allocation10 + $0x20] sm:$0xff]
    %v300 = vld [vmem:[#allocation10 + $0x28] sm:$0xff]
    %v301 = vld [vmem:[#allocation10 + $0x30] sm:$0xff]
    %v302 = vld [vmem:[#allocation10 + $0x38] sm:$0xff]
    %v303 = vld [vmem:[#allocation10 + $0x40] sm:$0xff]
    %v304 = vld [vmem:[#allocation10 + $0x48] sm:$0xff]
    %v305 = vld [vmem:[#allocation10 + $0x50] sm:$0xff]
    %v306 = vld [vmem:[#allocation10 + $0x58] sm:$0xff]
    %v307 = vld [vmem:[#allocation10 + $0x60] sm:$0xff]
    %v308 = vld [vmem:[#allocation10 + $0x68] sm:$0xff]
    %v309 = vld [vmem:[#allocation10 + $0x70] sm:$0xff]
    %v310 = vld [vmem:[#allocation10 + $0x78] sm:$0xff]
    %v311 = vld [vmem:[%s7] sm:$0x1]
    %v313 = vlaneseq
    %v314 = vshrl.u32 %v313, 7
    %v315 = vsub.s32 0, %v314
    %v316 = vrot.slane %v311, %v315
    %318 = vmatprep.subr.mxu0 0.0
    %319 = vmatpush1.msra.mxu0 %v295
    %320 = vmatprep.subr.mxu0 0.0
    %321 = vmatpush1.msra.mxu0 %v296
    %322 = vmatprep.subr.mxu0 0.0
    %323 = vmatpush1.msra.mxu0 %v297
    %324 = vmatprep.subr.mxu0 0.0
    %325 = vmatpush1.msra.mxu0 %v298
    %326 = vmatprep.subr.mxu0 0.0
    %327 = vmatpush1.msra.mxu0 %v299
    %328 = vmatprep.subr.mxu0 0.0
    %329 = vmatpush1.msra.mxu0 %v300
    %330 = vmatprep.subr.mxu0 0.0
    %331 = vmatpush1.msra.mxu0 %v301
    %332 = vmatprep.subr.mxu0 0.0
    %333 = vmatpush1.msra.mxu0 %v302
    %334 = vmatprep.subr.mxu0 0.0
    %335 = vmatpush1.msra.mxu0 %v303
    %336 = vmatprep.subr.mxu0 0.0
    %337 = vmatpush1.msra.mxu0 %v304
    %338 = vmatprep.subr.mxu0 0.0
    %339 = vmatpush1.msra.mxu0 %v305
    %340 = vmatprep.subr.mxu0 0.0
    %341 = vmatpush1.msra.mxu0 %v306
    %342 = vmatprep.subr.mxu0 0.0
    %343 = vmatpush1.msra.mxu0 %v307
    %344 = vmatprep.subr.mxu0 0.0
    %345 = vmatpush1.msra.mxu0 %v308
    %346 = vmatprep.subr.mxu0 0.0
    %347 = vmatpush1.msra.mxu0 %v309
    %348 = vmatprep.subr.mxu0 0.0
    %349 = vmatpush1.msra.mxu0 %v310
    %350 = vmatprep.subr.mxu0 0.0
    %351 = vmatpush1.msra.mxu0 0.0
    %352 = vmatprep.subr.mxu0 0.0
    %353 = vmatpush1.msra.mxu0 0.0
    %354 = vmatprep.subr.mxu0 0.0
    %355 = vmatpush1.msra.mxu0 0.0
    %356 = vmatprep.subr.mxu0 0.0
    %357 = vmatpush1.msra.mxu0 0.0
    %358 = vmatprep.subr.mxu0 0.0
    %359 = vmatpush1.msra.mxu0 0.0
    %360 = vmatprep.subr.mxu0 0.0
    %361 = vmatpush1.msra.mxu0 0.0
    %362 = vmatprep.subr.mxu0 0.0
    %363 = vmatpush1.msra.mxu0 0.0
    %364 = vmatprep.subr.mxu0 0.0
    %365 = vmatpush1.msra.mxu0 0.0
    %366 = vmatprep.subr.mxu0 0.0
    %367 = vmatpush1.msra.mxu0 0.0
    %368 = vmatprep.subr.mxu0 0.0
    %369 = vmatpush1.msra.mxu0 0.0
    %370 = vmatprep.subr.mxu0 0.0
    %371 = vmatpush1.msra.mxu0 0.0
    %372 = vmatprep.subr.mxu0 0.0
    %373 = vmatpush1.msra.mxu0 0.0
    %374 = vmatprep.subr.mxu0 0.0
    %375 = vmatpush1.msra.mxu0 0.0
    %376 = vmatprep.subr.mxu0 0.0
    %377 = vmatpush1.msra.mxu0 0.0
    %378 = vmatprep.subr.mxu0 0.0
    %379 = vmatpush1.msra.mxu0 0.0
    %380 = vmatprep.subr.mxu0 0.0
    %381 = vmatpush1.msra.mxu0 0.0
    %382 = vmatprep.mubr.f32.mxu0 0.0
    %383 = vmatmul.mubr.f32.gmra.mrb[0].mxu0 %v294
    %v384 = vpop.f32.mrb[0].mxu0
    %v385 = vadd.f32 %v316, %v384
    %v386 = vpop.f32.mrb[0].mxu0
    %387 = vdwg.mxu0
    %v388 = vmax.f32 %v385, 0.0
    %v389 = vld [vmem:[#allocation11] sm:$0xff]
    %v390 = vld [vmem:[#allocation11 + $0x8] sm:$0xff]
    %v391 = vld [vmem:[#allocation11 + $0x10] sm:$0xff]
    %v392 = vld [vmem:[#allocation11 + $0x18] sm:$0xff]
    %v393 = vld [vmem:[#allocation11 + $0x20] sm:$0xff]
    %v394 = vld [vmem:[#allocation11 + $0x28] sm:$0xff]
    %v395 = vld [vmem:[#allocation11 + $0x30] sm:$0xff]
    %v396 = vld [vmem:[#allocation11 + $0x38] sm:$0xff]
    %v397 = vld [vmem:[#allocation11 + $0x40] sm:$0xff]
    %v398 = vld [vmem:[#allocation11 + $0x48] sm:$0xff]
    %v399 = vld [vmem:[#allocation11 + $0x50] sm:$0xff]
    %v400 = vld [vmem:[#allocation11 + $0x58] sm:$0xff]
    %v401 = vld [vmem:[#allocation11 + $0x60] sm:$0xff]
    %v402 = vld [vmem:[#allocation11 + $0x68] sm:$0xff]
    %v403 = vld [vmem:[#allocation11 + $0x70] sm:$0xff]
    %v404 = vld [vmem:[#allocation11 + $0x78] sm:$0xff]
    %v405 = vld [vmem:[%s9] sm:$0x1]
    %v407 = vlaneseq
    %v408 = vshrl.u32 %v407, 7
    %v409 = vsub.s32 0, %v408
    %v410 = vrot.slane %v405, %v409
    %412 = vmatprep.subr.mxu0 0.0
    %413 = vmatpush1.msra.mxu0 %v389
    %414 = vmatprep.subr.mxu0 0.0
    %415 = vmatpush1.msra.mxu0 %v390
    %416 = vmatprep.subr.mxu0 0.0
    %417 = vmatpush1.msra.mxu0 %v391
    %418 = vmatprep.subr.mxu0 0.0
    %419 = vmatpush1.msra.mxu0 %v392
    %420 = vmatprep.subr.mxu0 0.0
    %421 = vmatpush1.msra.mxu0 %v393
    %422 = vmatprep.subr.mxu0 0.0
    %423 = vmatpush1.msra.mxu0 %v394
    %424 = vmatprep.subr.mxu0 0.0
    %425 = vmatpush1.msra.mxu0 %v395
    %426 = vmatprep.subr.mxu0 0.0
    %427 = vmatpush1.msra.mxu0 %v396
    %428 = vmatprep.subr.mxu0 0.0
    %429 = vmatpush1.msra.mxu0 %v397
    %430 = vmatprep.subr.mxu0 0.0
    %431 = vmatpush1.msra.mxu0 %v398
    %432 = vmatprep.subr.mxu0 0.0
    %433 = vmatpush1.msra.mxu0 %v399
    %434 = vmatprep.subr.mxu0 0.0
    %435 = vmatpush1.msra.mxu0 %v400
    %436 = vmatprep.subr.mxu0 0.0
    %437 = vmatpush1.msra.mxu0 %v401
    %438 = vmatprep.subr.mxu0 0.0
    %439 = vmatpush1.msra.mxu0 %v402
    %440 = vmatprep.subr.mxu0 0.0
    %441 = vmatpush1.msra.mxu0 %v403
    %442 = vmatprep.subr.mxu0 0.0
    %443 = vmatpush1.msra.mxu0 %v404
    %444 = vmatprep.subr.mxu0 0.0
    %445 = vmatpush1.msra.mxu0 0.0
    %446 = vmatprep.subr.mxu0 0.0
    %447 = vmatpush1.msra.mxu0 0.0
    %448 = vmatprep.subr.mxu0 0.0
    %449 = vmatpush1.msra.mxu0 0.0
    %450 = vmatprep.subr.mxu0 0.0
    %451 = vmatpush1.msra.mxu0 0.0
    %452 = vmatprep.subr.mxu0 0.0
    %453 = vmatpush1.msra.mxu0 0.0
    %454 = vmatprep.subr.mxu0 0.0
    %455 = vmatpush1.msra.mxu0 0.0
    %456 = vmatprep.subr.mxu0 0.0
    %457 = vmatpush1.msra.mxu0 0.0
    %458 = vmatprep.subr.mxu0 0.0
    %459 = vmatpush1.msra.mxu0 0.0
    %460 = vmatprep.subr.mxu0 0.0
    %461 = vmatpush1.msra.mxu0 0.0
    %462 = vmatprep.subr.mxu0 0.0
    %463 = vmatpush1.msra.mxu0 0.0
    %464 = vmatprep.subr.mxu0 0.0
    %465 = vmatpush1.msra.mxu0 0.0
    %466 = vmatprep.subr.mxu0 0.0
    %467 = vmatpush1.msra.mxu0 0.0
    %468 = vmatprep.subr.mxu0 0.0
    %469 = vmatpush1.msra.mxu0 0.0
    %470 = vmatprep.subr.mxu0 0.0
    %471 = vmatpush1.msra.mxu0 0.0
    %472 = vmatprep.subr.mxu0 0.0
    %473 = vmatpush1.msra.mxu0 0.0
    %474 = vmatprep.subr.mxu0 0.0
    %475 = vmatpush1.msra.mxu0 0.0
    %476 = vmatprep.mubr.f32.mxu0 0.0
    %477 = vmatmul.mubr.f32.gmra.mrb[0].mxu0 %v388
    %v478 = vpop.f32.mrb[0].mxu0
    %v479 = vadd.f32 %v410, %v478
    %v480 = vpop.f32.mrb[0].mxu0
    %481 = vdwg.mxu0
    %v482 = vld [vmem:[#allocation5] sm:$0xff]
    %vm483 = vcmp.gt.f32.partialorder %v482, 0.0
    %v484 = vsel %vm483, %v479, -1e+08
    %485 = vmax.xlane.f32.xlu0 %v484
    %v486 = vpop.xlane.xlu0 %485
    %v487 = vsub.f32 %v484, %v486
    %v488 = vmul.f32 %v487, 1.442695
    %v489 = vpow.pop %v488
    %490 = vadd.xlane.f32.xlu0 %v489
    %v491 = vpop.xlane.xlu0 %490
    %v492 = vlog2.pop %v491
    %v493 = vmul.f32 %v492, 0.6931472
    %v494 = vsub.f32 %v487, %v493
    %v495 = vlaneseq
    %v496 = vand.u32 %v495, 127
    %vm497 = vcmp.ge.f32.partialorder %v484, %v486
    %v498 = vsel %vm497, %v496, 128
    %v499 = vand.u32 %v498, 65535
    %v500 = vshra.s32 %v498, 16
    %v501 = vcvt.s32.f32 %v499
    %v502 = vcvt.s32.f32 %v500
    %503 = vmin.xlane.f32.xlu0 %v502
    %v504 = vpop.xlane.xlu0 %503
    %vm505 = vcmp.eq.f32.partialorder %v502, %v504
    %v506 = vsel %vm505, %v501, inf
    %507 = vmin.xlane.f32.xlu0 %v506
    %v508 = vpop.xlane.xlu0 %507
    %v509 = vcvt.f32.s32 %v508
    %v510 = vcvt.f32.s32 %v504
    %v511 = vshll.u32 %v510, 16
    %v512 = vadd.s32 %v511, %v509
    %vm513 = vcmp.eq.s32.totalorder %v496, %v512
    %v514 = vsel %vm513, 1, 0
    %v515 = vcvt.s32.f32 %v514
    %v516 = vmul.f32 %v494, %v515
    %517 = vadd.xlane.f32.xlu0 %v516
    %v518 = vpop.xlane.xlu0 %517
    %vm519 = vcmp.eq.s32.totalorder %v496, 0
    %vm520 = vcmp.eq.s32.totalorder %v496, 1
    %vm521 = vcmp.eq.s32.totalorder %v496, 2
    %v522 = vcvt.s32.f32 %v512
    %v523 = vsel %vm521, %v522, 0.0
    %v524 = vsel %vm520, %v518, %v523
    %526 = vset.pattern.permute.xlu0 16
    %527 = vperm.xlu0 %526, %v479
    %v528 = vpop.permute.xlu0 %527
    %v530 = vsel %vm519, %v528, %v524
    %531 = vst [vmem:[#allocation13] sm:$0xff] %v530
    // Predicated region
    $region66: #{tpu_custom_call.1} parent=1 // pred_check
      _
    $region67: #{tpu_custom_call.1} parent=1 // pred_check_branch
      %533 = sbr.rel (0) target = $region69
    $region68: #{tpu_custom_call.1} parent=1 // pred_region
      %s535 = ssub.s32 128, 128
      %536 = vsyncadd [#allocation4], %s535
      %s538 = sshll.u32 [#allocation13], 4
      %s539 = int_to_ptr.vmem [resolvable:$true] %s538
      %541 = dma.vmem_to_hbm [thread:$0]  %s539, 128, %s10, [#allocation4]
    $region69: #{tpu_custom_call.1} parent=1 // pred_fallthru
      _
    // Predicated region
    $region70: #{tpu_custom_call.1} parent=1 // pred_check
      _
    $region71: #{tpu_custom_call.1} parent=1 // pred_check_branch
      %543 = sbr.rel (0) target = $region73
    $region72: #{tpu_custom_call.1} parent=1 // pred_region
      %544 = dma.done [#allocation4], 128
    $region73: #{tpu_custom_call.1} parent=1 // pred_fallthru
      _
    %545 = vsyncpa [#allocation3], 1
    %546 = vsyncpa [#allocation6], 1
    %547 = vsyncpa [#allocation9], 1
    %548 = vsyncpa [#allocation12], 1
    %549 = vsyncpa [#allocation4], 1

</llo_original>
